<compile_context>
chip_gen: v7x
topology: tpu7x:2x2x1
jax: 0.10.0
libtpu: 0.0.40
codegen_flags: <defaults>
</compile_context>

<pallas_src>
import math

import jax
import jax.numpy as jnp
from jax.experimental import pallas as pl
from jax.experimental.pallas import tpu as pltpu


def _lcm(a, b):
    return a * b // math.gcd(a, b)


def _add_bias_kernel(x_ref, b_ref, o_ref):
    # x: (TR, TL); b: (TR, 1) or (1, TL). One VPU add, broadcast in-vreg.
    o_ref[...] = x_ref[...] + b_ref[...]


def _choose_tiles(R, L, itemsize, bias_along_rows, target_bytes=4 * 1024 * 1024):
    """Pick (TR, TL, sub): last-two block dims are multiples of (sub, 128) or
    the full extent; one x block targets ~target_bytes; the padded bias buffer
    is charged to the budget (a (tr,1) bias column pads to (tr,128) in VMEM);
    tl is grown before tr (lane-dense output stores are the big lever)."""
    sub = max(8, 32 // itemsize)  # dtype-native sublane packing: f32->8, bf16->16, i8->32
    # Lane tile first: full extent if a `sub`-row slab fits the budget, else
    # the largest multiple of 128 that does.
    if L <= 128 or L * sub * itemsize <= target_bytes:
        tl = L
    else:
        cap = (target_bytes // (sub * itemsize)) // 128 * 128
        tl = max(128, min((L // 128) * 128, cap))
    # Sublane tile: fill the byte budget, counting the lane-padded bias column.
    pad_cols = 128 if bias_along_rows else 0
    per_row_bytes = (tl + pad_cols) * itemsize
    max_tr = max(sub, (target_bytes // per_row_bytes) // sub * sub)
    tr = R if R <= max_tr else max_tr
    return tr, tl, sub


def _tiled_bias_add(x2d, b2d, *, bias_along_rows, donate_x=False):
    """x2d: (R, L); b2d: (R, 1) if bias_along_rows else (1, L)."""
    R, L = x2d.shape
    itemsize = jnp.dtype(x2d.dtype).itemsize
    tr, tl, sub = _choose_tiles(R, L, itemsize, bias_along_rows)

    # v7x has 2 TensorCores per chip sharing HBM: make sure mid-size inputs
    # split into >=2 blocks along a "parallel" axis (neutral on v5e/v6e).
    if (pl.cdiv(R, tr) == 1 and pl.cdiv(L, tl) == 1
            and R * L * itemsize >= 2 * 1024 * 1024):
        if R >= 2 * sub:
            tr = max(sub, ((R // 2) // sub) * sub)
        elif L >= 256:
            tl = max(128, ((L // 2) // 128) * 128)

    grid = (pl.cdiv(R, tr), pl.cdiv(L, tl))
    if bias_along_rows:
        b_spec = pl.BlockSpec((tr, 1), lambda i, j: (i, 0))
    else:
        b_spec = pl.BlockSpec((1, tl), lambda i, j: (0, j))

    return pl.pallas_call(
        _add_bias_kernel,
        out_shape=jax.ShapeDtypeStruct((R, L), x2d.dtype),
        grid=grid,
        in_specs=[pl.BlockSpec((tr, tl), lambda i, j: (i, j)), b_spec],
        out_specs=pl.BlockSpec((tr, tl), lambda i, j: (i, j)),
        # Footprint win only when the caller actually donates x.
        input_output_aliases=({0: 0} if donate_x else {}),
        compiler_params=pltpu.CompilerParams(
            dimension_semantics=("parallel", "parallel"),
            vmem_limit_bytes=48 * 1024 * 1024,
        ),
    )(x2d, b2d)


def add_bias(x, bias_param, *, donate_x=False):
    """bias_param has shape (C, 1), mirroring the PyTorch Parameter."""
    C = bias_param.shape[0]
    b_col = bias_param.astype(x.dtype).reshape(C, 1)  # (C, 1); see dtype note.
    b_vec = b_col.reshape(C)                          # (C,)

    if x.ndim == 2:
        N, Cx = x.shape
        assert Cx == C
        total = N * C
        if C < 128 and total >= 128:
            # Narrow-C / wide-N: contiguous flatten to (R, TL) with TL a
            # multiple of both C and 128 that divides N*C; bias pre-tiled to
            # one lane-dense (1, TL) row. No transposes, output stays
            # lane-dense.
            base = _lcm(C, 128)
            if total % base == 0:
                max_tl = 4096
                f = max(1, min(total // base, max(1, max_tl // base)))
                while (total // base) % f != 0:
                    f -= 1
                TL = base * f
                x2d = x.reshape(total // TL, TL)              # free reshape
                b_row = jnp.tile(b_vec, TL // C).reshape(1, TL)
                y2d = _tiled_bias_add(x2d, b_row, bias_along_rows=False,
                                      donate_x=donate_x)
                return y2d.reshape(N, C)
        # Direct path (wide C, tiny shapes, or non-dividing flatten).
        return _tiled_bias_add(x, b_vec.reshape(1, C), bias_along_rows=False,
                               donate_x=donate_x)

    elif x.ndim == 4:
        N, Cx, H, W = x.shape
        assert Cx == C
        hw = H * W
        if hw >= 128 and hw % 128 == 0:
            # Spatial axis already lane-dense: per-row bias column.
            x2d = x.reshape(N * C, hw)            # free, contiguous reshape
            b_rows = jnp.tile(b_col, (N, 1))      # (N*C, 1); row r -> bias[r % C]
            y2d = _tiled_bias_add(x2d, b_rows, bias_along_rows=True,
                                  donate_x=donate_x)
        else:
            # Small / unaligned spatial: flatten per sample so the lane axis is
            # C*H*W (unmasked vst instead of vst.msk on <128-lane rows).
            x2d = x.reshape(N, C * hw)            # free, contiguous reshape
            b_row = jnp.repeat(b_vec, hw).reshape(1, C * hw)
            y2d = _tiled_bias_add(x2d, b_row, bias_along_rows=False,
                                  donate_x=donate_x)
        return y2d.reshape(N, C, H, W)

    else:
        raise ValueError(f"AddBias expects 2D or 4D input, got ndim={x.ndim}")


if __name__ == "__main__":
    key = jax.random.PRNGKey(0)
    (k_bias, k_x2, k_x2b, k_bias_big, k_x2c, k_x4, k_x4s, k_xbf) = jax.random.split(key, 8)

    C = 4
    # Deterministic "parameter": bias vector of shape (C,), stored as (C, 1)
    # like nn.Parameter(bias.unsqueeze(1)).
    bias_vec = jax.random.normal(k_bias, (C,), dtype=jnp.float32)
    bias_param = bias_vec.reshape(C, 1)

    # 2D path, tiny (direct full-extent blocks): x shape (N, C).
    x2 = jax.random.normal(k_x2, (2, C), dtype=jnp.float32)
    y2 = jax.block_until_ready(add_bias(x2, bias_param))
    assert jnp.allclose(y2, x2 + bias_vec.reshape(1, C), atol=1e-6), "2D path mismatch"

    # 2D path, narrow-C / wide-N (exercises the transpose-free flatten path).
    x2b = jax.random.normal(k_x2b, (256, C), dtype=jnp.float32)
    y2b = jax.block_until_ready(add_bias(x2b, bias_param))
    assert jnp.allclose(y2b, x2b + bias_vec.reshape(1, C), atol=1e-6), "2D wide-N mismatch"

    # 2D path, wide-C (per-lane-bias path).
    C_big = 256
    bias_big = jax.random.normal(k_bias_big, (C_big,), dtype=jnp.float32)
    x2c = jax.random.normal(k_x2c, (16, C_big), dtype=jnp.float32)
    y2c = jax.block_until_ready(add_bias(x2c, bias_big.reshape(C_big, 1)))
    assert jnp.allclose(y2c, x2c + bias_big.reshape(1, C_big), atol=1e-6), "2D wide-C mismatch"

    # 4D path (NCHW), H*W multiple of 128: (N*C, H*W) + bias column.
    x4 = jax.random.normal(k_x4, (2, C, 16, 16), dtype=jnp.float32)
    y4 = jax.block_until_ready(add_bias(x4, bias_param))
    assert jnp.allclose(y4, x4 + bias_vec.reshape(1, C, 1, 1), atol=1e-6), "4D path mismatch"

    # 4D path, small / unaligned H*W: lane-dense (N, C*H*W) flatten.
    x4s = jax.random.normal(k_x4s, (2, C, 7, 7), dtype=jnp.float32)
    y4s = jax.block_until_ready(add_bias(x4s, bias_param))
    assert jnp.allclose(y4s, x4s + bias_vec.reshape(1, C, 1, 1), atol=1e-6), "4D small-HW mismatch"

    # bf16 input (exercises dtype-aware sublane granularity; bias cast to bf16).
    xbf = jax.random.normal(k_xbf, (32, C_big), dtype=jnp.float32).astype(jnp.bfloat16)
    bias_big_bf = bias_big.astype(jnp.bfloat16)
    ybf = jax.block_until_ready(add_bias(xbf, bias_big.reshape(C_big, 1)))
    assert jnp.allclose(ybf.astype(jnp.float32),
                        (xbf + bias_big_bf.reshape(1, C_big)).astype(jnp.float32),
                        atol=1e-2), "bf16 path mismatch"

    print("KERNEL_OK")
</pallas_src>

<mosaic_0001>
module attributes {stable_mosaic.version = 11 : i64} {
  func.func @_add_bias_kernel(%arg0: i32, %arg1: i32, %arg2: memref<2x4xf32, #tpu.memory_space<vmem>>, %arg3: memref<1x4xf32, #tpu.memory_space<vmem>>, %arg4: memref<2x4xf32, #tpu.memory_space<vmem>>) attributes {dimension_semantics = [#tpu.dimension_semantics<parallel>, #tpu.dimension_semantics<parallel>], iteration_bounds = array<i64: 1, 1>, scalar_prefetch = 0 : i64, scratch_operands = 0 : i64, tpu.core_type = #tpu.core_type<tc>, window_params = [{transform_indices = @transform_0, window_bounds = array<i64: 2, 4>}, {transform_indices = @transform_1, window_bounds = array<i64: 1, 4>}, {transform_indices = @transform_2, window_bounds = array<i64: 2, 4>}]} {
    %c0 = arith.constant 0 : index
    %c0_0 = arith.constant 0 : index
    %0 = vector.load %arg2[%c0, %c0_0] : memref<2x4xf32, #tpu.memory_space<vmem>>, vector<2x4xf32>
    %c0_1 = arith.constant 0 : index
    %c0_2 = arith.constant 0 : index
    %1 = vector.load %arg3[%c0_1, %c0_2] : memref<1x4xf32, #tpu.memory_space<vmem>>, vector<1x4xf32>
    %2 = vector.broadcast %1 : vector<1x4xf32> to vector<2x4xf32>
    %3 = arith.addf %0, %2 : vector<2x4xf32>
    %c0_3 = arith.constant 0 : index
    %c0_4 = arith.constant 0 : index
    %4 = vector.load %arg4[%c0_3, %c0_4] : memref<2x4xf32, #tpu.memory_space<vmem>>, vector<2x4xf32>
    tpu.vector_store %arg4[%c0_3, %c0_4], %3 {strides = array<i32>} : memref<2x4xf32, #tpu.memory_space<vmem>>, vector<2x4xf32>,
    return
  }
  func.func @transform_0(%arg0: i32, %arg1: i32) -> (i32, i32) {
    %c0_i32 = arith.constant 0 : i32
    return %arg0, %arg1 : i32, i32
  }
  func.func @transform_1(%arg0: i32, %arg1: i32) -> (i32, i32) {
    %c0_i32 = arith.constant 0 : i32
    %c0_i32_0 = arith.constant 0 : i32
    return %c0_i32, %arg1 : i32, i32
  }
  func.func @transform_2(%arg0: i32, %arg1: i32) -> (i32, i32) {
    %c0_i32 = arith.constant 0 : i32
    return %arg0, %arg1 : i32, i32
  }
}

</mosaic_0001>

<llo_original>
// kernel: tpu_custom_call.1
$region0: #{tpu_custom_call.1}
  #allocation0 [shape = 'u32[]', space=smem, size = 0x4, offset = 0x4, fixed_abs, tag = 'smem constant byte address 0x4 - core index']
  #allocation1 [shape = 'u32[144,128]{1,0:T(1,128)}', space=vmem, size = 0x12000, scoped, tag = 'internal scratch']
  %s0 = inlined_call_operand.hbm [shape: f32[2,4], index: 0, kind: input, shape index: {}]
  %s1 = inlined_call_operand.vmem [shape: f32[1,4], index: 1, kind: input, shape index: {}]
  %s2 = inlined_call_operand.hbm [shape: f32[2,4], index: 2, kind: output, shape index: {}]
  %s3 = sld [smem:[#allocation0]]
  $region22: #{tpu_custom_call.1} parent=0
    _
  %s5 = ssub.s32 1, %s3
  %s6 = scalar_select 0, %s5, %s3
  $region1: #{tpu_custom_call.1} parent=0
    #allocation2 [shape = 'u8[1024]{0}', space=vmem, size = 0x400, scoped, tag = 'input window, operand 0, single buffered']
    #allocation3 [shape = 's32[1]{0}', space=sflag, size = 0x4, scoped, tag = 'scoped memory for tpu_custom_call.1']
    #allocation4 [shape = 's32[1]{0}', space=sflag, size = 0x4, scoped, tag = 'scoped memory for tpu_custom_call.1']
    #allocation5 [shape = 'u8[1024]{0}', space=vmem, size = 0x400, scoped, tag = 'output window, operand 0, single buffered']
    %7 = vsyncpa [#allocation3], 0
    %8 = vsyncpa [#allocation4], 0
    // Predicated region
    $region2: #{tpu_custom_call.1} parent=1 // pred_check
      _
    $region3: #{tpu_custom_call.1} parent=1 // pred_check_branch
      %10 = sbr.rel (0) target = $region5
    $region4: #{tpu_custom_call.1} parent=1 // pred_region
      %s12 = ssub.s32 32, 32
      %13 = vsyncadd [#allocation3], %s12
      %s15 = sshll.u32 [#allocation2], 4
      %s16 = int_to_ptr.vmem [resolvable:$true] %s15
      %18 = dma.hbm_to_vmem [thread:$0]  %s0, 32, %s16, [#allocation3]
    $region5: #{tpu_custom_call.1} parent=1 // pred_fallthru
      _
    // Predicated region
    $region6: #{tpu_custom_call.1} parent=1 // pred_check
      _
    $region7: #{tpu_custom_call.1} parent=1 // pred_check_branch
      %20 = sbr.rel (0) target = $region9
    $region8: #{tpu_custom_call.1} parent=1 // pred_region
      _
    $region9: #{tpu_custom_call.1} parent=1 // pred_fallthru
      _
    // Predicated region
    $region10: #{tpu_custom_call.1} parent=1 // pred_check
      _
    $region11: #{tpu_custom_call.1} parent=1 // pred_check_branch
      %22 = sbr.rel (0) target = $region13
    $region12: #{tpu_custom_call.1} parent=1 // pred_region
      %23 = dma.done [#allocation3], 32
    $region13: #{tpu_custom_call.1} parent=1 // pred_fallthru
      _
    %v24 = vld [vmem:[#allocation2] sm:$0x3]
    %v25 = vld [vmem:[%s1] sm:$0x1]
    %v27 = vlaneseq
    %v28 = vshrl.u32 %v27, 7
    %v29 = vsub.s32 0, %v28
    %v30 = vrot.slane %v25, %v29
    %v32 = vadd.f32 %v24, %v30
    %vm33 = vcmask 25600
    %34 = vst.msk [vmem:[#allocation5] sm:$0x3] %vm33, %v32
    // Predicated region
    $region14: #{tpu_custom_call.1} parent=1 // pred_check
      _
    $region15: #{tpu_custom_call.1} parent=1 // pred_check_branch
      %36 = sbr.rel (0) target = $region17
    $region16: #{tpu_custom_call.1} parent=1 // pred_region
      %s38 = ssub.s32 32, 32
      %39 = vsyncadd [#allocation4], %s38
      %s41 = sshll.u32 [#allocation5], 4
      %s42 = int_to_ptr.vmem [resolvable:$true] %s41
      %44 = dma.vmem_to_hbm [thread:$0]  %s42, 32, %s2, [#allocation4]
    $region17: #{tpu_custom_call.1} parent=1 // pred_fallthru
      _
    // Predicated region
    $region18: #{tpu_custom_call.1} parent=1 // pred_check
      _
    $region19: #{tpu_custom_call.1} parent=1 // pred_check_branch
      %46 = sbr.rel (0) target = $region21
    $region20: #{tpu_custom_call.1} parent=1 // pred_region
      %47 = dma.done [#allocation4], 32
    $region21: #{tpu_custom_call.1} parent=1 // pred_fallthru
      _
    %48 = vsyncpa [#allocation3], 1
    %49 = vsyncpa [#allocation4], 1

</llo_original>
